<compile_context>
chip_gen: v7x
topology: tpu7x:2x2x1
jax: 0.10.0
libtpu: 0.0.40
codegen_flags: <defaults>
</compile_context>

<pallas_src>
import functools

import numpy as np
import jax
import jax.numpy as jnp
from jax.experimental import pallas as pl
from jax.experimental.pallas import tpu as pltpu

KSIZE = 7   # Conv1d kernel_size
PAD = 3     # Conv1d padding


def _round_up(n, m):
    return ((n + m - 1) // m) * m


def _pick_b_tile(batch, max_tile=8):
    """Largest batch fold that still leaves >=2 grid steps (keeps both v7x TCs busy)."""
    for t in range(min(max_tile, batch), 0, -1):
        if batch % t == 0 and batch // t >= 2:
            return t
    return 1


def _pack_weight(w, c_in, grow, c_in_pad, grow_pad, n_prev):
    """(KSIZE, grow, c_in + n_prev*grow) -> fused (grow_pad, KSIZE*cur_pad) layout.

    Column order matches the in-kernel tap stack: segments (input, block0, ...),
    tap-major within a segment, channel within a tap; padded rows/cols are zero,
    so padded channels contribute exactly 0 to the matmul.
    """
    ks, g, _ = w.shape
    seg_real = [c_in] + [grow] * n_prev
    seg_pad = [c_in_pad] + [grow_pad] * n_prev
    cur_pad = sum(seg_pad)
    out = np.zeros((grow_pad, ks * cur_pad), np.float32)
    o_off = p_off = 0
    for real, pad in zip(seg_real, seg_pad):
        for k in range(ks):
            col = ks * p_off + k * pad
            out[:g, col:col + real] = w[k, :, o_off:o_off + real]
        o_off += real
        p_off += pad
    return out


def _denseblock_kernel(x_ref, *refs, blocknum, c_in, grow, c_in_pad, grow_pad,
                       length, b_tile):
    """refs = (w_0, b_0, ..., w_{n-1}, b_{n-1}, out_ref, stack_ref, shift_ref)."""
    w_refs = [refs[2 * i] for i in range(blocknum)]
    b_refs = [refs[2 * i + 1] for i in range(blocknum)]
    out_ref = refs[2 * blocknum]
    stack_ref = refs[2 * blocknum + 1]   # (KSIZE*C_stack_pad, b_tile*L) bf16 tap stack
    shift_ref = refs[2 * blocknum + 2]   # (max_seg_pad, L + 2*PAD)      bf16 staging

    L = length

    # Zero ONLY the constant halo lane-columns of the tiny staging buffer.
    # (No full-scratch zeroing: every stack element read is written first.)
    zeros_halo = jnp.zeros((shift_ref.shape[0], PAD), shift_ref.dtype)
    shift_ref[:, 0:PAD] = zeros_halo
    shift_ref[:, PAD + L:2 * PAD + L] = zeros_halo

    def scatter_taps(seg_rows, row_base, vals, b):
        # vals: (seg_rows, L) f32 features of one sample; write their 7
        # lane-shifted bf16 copies (tap-major) -- touches only seg_rows rows.
        shift_ref[0:seg_rows, PAD:PAD + L] = vals.astype(shift_ref.dtype)
        for k in range(KSIZE):
            stack_ref[row_base + k * seg_rows:row_base + (k + 1) * seg_rows,
                      b * L:(b + 1) * L] = shift_ref[0:seg_rows, k:k + L]

    # Stage the input: exact f32 passthrough to the output + bf16 tap stack.
    for b in range(b_tile):
        out_ref[b, 0:c_in, :] = x_ref[b, 0:c_in, :]
        scatter_taps(c_in_pad, 0, x_ref[b], b)

    cur_pad = c_in_pad
    out_off = c_in
    for i in range(blocknum):
        # Tap-fused Conv1d: one MXU dot over all 7 taps and all channels so far.
        acc = jnp.dot(w_refs[i][...], stack_ref[0:KSIZE * cur_pad, :],
                      preferred_element_type=jnp.float32)     # (grow_pad, b_tile*L)
        h = jnp.maximum(acc + b_refs[i][...], 0.0)            # fused bias + ReLU (f32)
        # TODO(synk): nn.Dropout() is identity in eval mode; training-mode
        # stochastic dropout (p=0.5) is not implemented here.
        for b in range(b_tile):
            out_ref[b, out_off:out_off + grow, :] = h[0:grow, b * L:(b + 1) * L]
            if i + 1 < blocknum:        # last block's features are never re-read
                scatter_taps(grow_pad, KSIZE * cur_pad, h[:, b * L:(b + 1) * L], b)
        cur_pad += grow_pad
        out_off += grow


def denseblock_forward(x, weights, biases, *, dot_dtype=jnp.bfloat16, b_tile=None):
    """x: (B, C_in, L); weights[i]: (KSIZE, grow, C_in + i*grow); biases[i]: (grow, 1)."""
    B, c_in, L = x.shape
    blocknum = len(weights)
    if blocknum == 0:
        return x
    grow = weights[0].shape[1]
    c_total = c_in + blocknum * grow

    sub = 16 if dot_dtype == jnp.bfloat16 else 8    # sublane pack of the dot dtype
    c_in_pad = _round_up(c_in, sub)
    grow_pad = _round_up(grow, sub)
    if b_tile is None:
        b_tile = _pick_b_tile(B)
    assert B % b_tile == 0, (B, b_tile)

    # Host-side packing: channel-padded input, fused tap-major bf16 weights,
    # padded f32 biases (padded output rows give relu(0+0)=0, so pad rows of
    # the tap stack stay exactly zero).
    args = [jnp.pad(x, ((0, 0), (0, c_in_pad - c_in), (0, 0)))]
    in_specs = [pl.BlockSpec((b_tile, c_in_pad, L), lambda g: (g, 0, 0))]
    for i in range(blocknum):
        w2 = _pack_weight(np.asarray(weights[i]), c_in, grow, c_in_pad, grow_pad, i)
        b2 = np.zeros((grow_pad, 1), np.float32)
        b2[:grow, 0] = np.asarray(biases[i]).reshape(-1)
        args += [jnp.asarray(w2, dtype=dot_dtype), jnp.asarray(b2)]
        # Constant-index blocks: fetched once, stay resident across grid steps.
        in_specs.append(pl.BlockSpec(w2.shape, lambda g: (0, 0)))
        in_specs.append(pl.BlockSpec(b2.shape, lambda g: (0, 0)))

    stack_c = c_in_pad + max(blocknum - 1, 0) * grow_pad   # last block never re-read
    kernel = functools.partial(
        _denseblock_kernel, blocknum=blocknum, c_in=c_in, grow=grow,
        c_in_pad=c_in_pad, grow_pad=grow_pad, length=L, b_tile=b_tile)

    return pl.pallas_call(
        kernel,
        out_shape=jax.ShapeDtypeStruct((B, c_total, L), jnp.float32),
        grid=(B // b_tile,),
        in_specs=in_specs,
        out_specs=pl.BlockSpec((b_tile, c_total, L), lambda g: (g, 0, 0)),
        scratch_shapes=[
            pltpu.VMEM((KSIZE * stack_c, b_tile * L), dot_dtype),           # tap stack
            pltpu.VMEM((max(c_in_pad, grow_pad), L + 2 * PAD), dot_dtype),  # shift staging
        ],
        compiler_params=pltpu.CompilerParams(
            dimension_semantics=("parallel",),
            vmem_limit_bytes=48 * 1024 * 1024),
    )(*args)


def _reference(x, weights, biases):
    """Pure-JAX f32 reference (lax.conv) mirroring Denseblock.forward (eval mode)."""
    feats = x
    outs = [x]
    for w, b in zip(weights, biases):
        rhs = jnp.transpose(w, (1, 2, 0))                     # (grow, C_i, KSIZE)
        y = jax.lax.conv_general_dilated(
            feats, rhs, window_strides=(1,), padding=[(PAD, PAD)],
            dimension_numbers=("NCW", "OIW", "NCW"))
        y = jnp.maximum(y + b.reshape(1, -1, 1), 0.0)
        outs.append(y)
        feats = jnp.concatenate(outs, axis=1)
    return feats


if __name__ == "__main__":
    B, c_in, L = 2, 4, 16        # batch=2, input channels=4, sequence length=16
    blocknum, grow = 3, 4        # final channels = 4 + 3*4 = 16

    key = jax.random.PRNGKey(0)
    key, kx = jax.random.split(key)
    x = jax.random.normal(kx, (B, c_in, L), jnp.float32)

    weights, biases = [], []
    cur = c_in
    for _ in range(blocknum):
        key, kw_, kb_ = jax.random.split(key, 3)
        weights.append(0.2 * jax.random.normal(kw_, (KSIZE, grow, cur), jnp.float32))
        biases.append(0.1 * jax.random.normal(kb_, (grow, 1), jnp.float32))
        cur += grow

    out = denseblock_forward(x, weights, biases)
    jax.block_until_ready(out)

    ref = _reference(x, weights, biases)
    assert out.shape == (B, c_in + blocknum * grow, L)
    # bf16 dot operands (f32 accumulation) vs the f32 reference -> loosened tol.
    max_err = float(jnp.max(jnp.abs(out - ref)))
    assert jnp.allclose(out, ref, rtol=5e-2, atol=5e-2), max_err
    print("KERNEL_OK")
</pallas_src>

<mosaic_0001>
module attributes {stable_mosaic.version = 11 : i64} {
  func.func @_denseblock_kernel(%arg0: i32, %arg1: memref<1x16x16xf32, #tpu.memory_space<vmem>>, %arg2: memref<16x112xbf16, #tpu.memory_space<vmem>>, %arg3: memref<16x1xf32, #tpu.memory_space<vmem>>, %arg4: memref<16x224xbf16, #tpu.memory_space<vmem>>, %arg5: memref<16x1xf32, #tpu.memory_space<vmem>>, %arg6: memref<16x336xbf16, #tpu.memory_space<vmem>>, %arg7: memref<16x1xf32, #tpu.memory_space<vmem>>, %arg8: memref<1x16x16xf32, #tpu.memory_space<vmem>>, %arg9: memref<336x16xbf16, #tpu.memory_space<vmem>>, %arg10: memref<16x22xbf16, #tpu.memory_space<vmem>>) attributes {dimension_semantics = [#tpu.dimension_semantics<parallel>], iteration_bounds = array<i64: 2>, scalar_prefetch = 0 : i64, scratch_operands = 2 : i64, tpu.core_type = #tpu.core_type<tc>, window_params = [{transform_indices = @transform_0, window_bounds = array<i64: 1, 16, 16>}, {pipeline_mode = #tpu.pipeline_mode<synchronous>, transform_indices = @transform_1, window_bounds = array<i64: 16, 112>}, {pipeline_mode = #tpu.pipeline_mode<synchronous>, transform_indices = @transform_2, window_bounds = array<i64: 16, 1>}, {pipeline_mode = #tpu.pipeline_mode<synchronous>, transform_indices = @transform_3, window_bounds = array<i64: 16, 224>}, {pipeline_mode = #tpu.pipeline_mode<synchronous>, transform_indices = @transform_4, window_bounds = array<i64: 16, 1>}, {pipeline_mode = #tpu.pipeline_mode<synchronous>, transform_indices = @transform_5, window_bounds = array<i64: 16, 336>}, {pipeline_mode = #tpu.pipeline_mode<synchronous>, transform_indices = @transform_6, window_bounds = array<i64: 16, 1>}, {transform_indices = @transform_7, window_bounds = array<i64: 1, 16, 16>}]} {
    %cst = arith.constant 0.000000e+00 : bf16
    %0 = vector.broadcast %cst : bf16 to vector<16x3xbf16>
    %c0 = arith.constant 0 : index
    %c0_0 = arith.constant 0 : index
    %1 = vector.load %arg10[%c0, %c0_0] : memref<16x22xbf16, #tpu.memory_space<vmem>>, vector<16x3xbf16>
    tpu.vector_store %arg10[%c0, %c0_0], %0 {strides = array<i32>} : memref<16x22xbf16, #tpu.memory_space<vmem>>, vector<16x3xbf16>,
    %c0_1 = arith.constant 0 : index
    %c19 = arith.constant 19 : index
    %2 = vector.load %arg10[%c0_1, %c19] : memref<16x22xbf16, #tpu.memory_space<vmem>>, vector<16x3xbf16>
    tpu.vector_store %arg10[%c0_1, %c19], %0 {strides = array<i32>} : memref<16x22xbf16, #tpu.memory_space<vmem>>, vector<16x3xbf16>,
    %c0_2 = arith.constant 0 : index
    %c0_3 = arith.constant 0 : index
    %c0_4 = arith.constant 0 : index
    %3 = vector.load %arg1[%c0_2, %c0_3, %c0_4] : memref<1x16x16xf32, #tpu.memory_space<vmem>>, vector<1x4x16xf32>
    %4 = vector.shape_cast %3 : vector<1x4x16xf32> to vector<4x16xf32>
    %c0_5 = arith.constant 0 : index
    %c0_6 = arith.constant 0 : index
    %c0_7 = arith.constant 0 : index
    %5 = vector.load %arg8[%c0_5, %c0_6, %c0_7] : memref<1x16x16xf32, #tpu.memory_space<vmem>>, vector<1x4x16xf32>
    %6 = vector.shape_cast %5 : vector<1x4x16xf32> to vector<4x16xf32>
    %7 = vector.shape_cast %4 : vector<4x16xf32> to vector<1x4x16xf32>
    tpu.vector_store %arg8[%c0_5, %c0_6, %c0_7], %7 {strides = array<i32>} : memref<1x16x16xf32, #tpu.memory_space<vmem>>, vector<1x4x16xf32>,
    %c0_8 = arith.constant 0 : index
    %c0_9 = arith.constant 0 : index
    %c0_10 = arith.constant 0 : index
    %8 = vector.load %arg1[%c0_8, %c0_9, %c0_10] : memref<1x16x16xf32, #tpu.memory_space<vmem>>, vector<1x16x16xf32>
    %9 = vector.shape_cast %8 : vector<1x16x16xf32> to vector<16x16xf32>
    %10 = arith.truncf %9 : vector<16x16xf32> to vector<16x16xbf16>
    %c0_11 = arith.constant 0 : index
    %c3 = arith.constant 3 : index
    %11 = vector.load %arg10[%c0_11, %c3] : memref<16x22xbf16, #tpu.memory_space<vmem>>, vector<16x16xbf16>
    tpu.vector_store %arg10[%c0_11, %c3], %10 {strides = array<i32>} : memref<16x22xbf16, #tpu.memory_space<vmem>>, vector<16x16xbf16>,
    %c0_12 = arith.constant 0 : index
    %c0_13 = arith.constant 0 : index
    %12 = vector.load %arg10[%c0_12, %c0_13] : memref<16x22xbf16, #tpu.memory_space<vmem>>, vector<16x16xbf16>
    %c0_14 = arith.constant 0 : index
    %c0_15 = arith.constant 0 : index
    %13 = vector.load %arg9[%c0_14, %c0_15] : memref<336x16xbf16, #tpu.memory_space<vmem>>, vector<16x16xbf16>
    tpu.vector_store %arg9[%c0_14, %c0_15], %12 {strides = array<i32>} : memref<336x16xbf16, #tpu.memory_space<vmem>>, vector<16x16xbf16>,
    %c0_16 = arith.constant 0 : index
    %c1 = arith.constant 1 : index
    %14 = vector.load %arg10[%c0_16, %c1] : memref<16x22xbf16, #tpu.memory_space<vmem>>, vector<16x16xbf16>
    %c16 = arith.constant 16 : index
    %c0_17 = arith.constant 0 : index
    %15 = vector.load %arg9[%c16, %c0_17] : memref<336x16xbf16, #tpu.memory_space<vmem>>, vector<16x16xbf16>
    tpu.vector_store %arg9[%c16, %c0_17], %14 {strides = array<i32>} : memref<336x16xbf16, #tpu.memory_space<vmem>>, vector<16x16xbf16>,
    %c0_18 = arith.constant 0 : index
    %c2 = arith.constant 2 : index
    %16 = vector.load %arg10[%c0_18, %c2] : memref<16x22xbf16, #tpu.memory_space<vmem>>, vector<16x16xbf16>
    %c32 = arith.constant 32 : index
    %c0_19 = arith.constant 0 : index
    %17 = vector.load %arg9[%c32, %c0_19] : memref<336x16xbf16, #tpu.memory_space<vmem>>, vector<16x16xbf16>
    tpu.vector_store %arg9[%c32, %c0_19], %16 {strides = array<i32>} : memref<336x16xbf16, #tpu.memory_space<vmem>>, vector<16x16xbf16>,
    %c0_20 = arith.constant 0 : index
    %c3_21 = arith.constant 3 : index
    %18 = vector.load %arg10[%c0_20, %c3_21] : memref<16x22xbf16, #tpu.memory_space<vmem>>, vector<16x16xbf16>
    %c48 = arith.constant 48 : index
    %c0_22 = arith.constant 0 : index
    %19 = vector.load %arg9[%c48, %c0_22] : memref<336x16xbf16, #tpu.memory_space<vmem>>, vector<16x16xbf16>
    tpu.vector_store %arg9[%c48, %c0_22], %18 {strides = array<i32>} : memref<336x16xbf16, #tpu.memory_space<vmem>>, vector<16x16xbf16>,
    %c0_23 = arith.constant 0 : index
    %c4 = arith.constant 4 : index
    %20 = vector.load %arg10[%c0_23, %c4] : memref<16x22xbf16, #tpu.memory_space<vmem>>, vector<16x16xbf16>
    %c64 = arith.constant 64 : index
    %c0_24 = arith.constant 0 : index
    %21 = vector.load %arg9[%c64, %c0_24] : memref<336x16xbf16, #tpu.memory_space<vmem>>, vector<16x16xbf16>
    tpu.vector_store %arg9[%c64, %c0_24], %20 {strides = array<i32>} : memref<336x16xbf16, #tpu.memory_space<vmem>>, vector<16x16xbf16>,
    %c0_25 = arith.constant 0 : index
    %c5 = arith.constant 5 : index
    %22 = vector.load %arg10[%c0_25, %c5] : memref<16x22xbf16, #tpu.memory_space<vmem>>, vector<16x16xbf16>
    %c80 = arith.constant 80 : index
    %c0_26 = arith.constant 0 : index
    %23 = vector.load %arg9[%c80, %c0_26] : memref<336x16xbf16, #tpu.memory_space<vmem>>, vector<16x16xbf16>
    tpu.vector_store %arg9[%c80, %c0_26], %22 {strides = array<i32>} : memref<336x16xbf16, #tpu.memory_space<vmem>>, vector<16x16xbf16>,
    %c0_27 = arith.constant 0 : index
    %c6 = arith.constant 6 : index
    %24 = vector.load %arg10[%c0_27, %c6] : memref<16x22xbf16, #tpu.memory_space<vmem>>, vector<16x16xbf16>
    %c96 = arith.constant 96 : index
    %c0_28 = arith.constant 0 : index
    %25 = vector.load %arg9[%c96, %c0_28] : memref<336x16xbf16, #tpu.memory_space<vmem>>, vector<16x16xbf16>
    tpu.vector_store %arg9[%c96, %c0_28], %24 {strides = array<i32>} : memref<336x16xbf16, #tpu.memory_space<vmem>>, vector<16x16xbf16>,
    %c0_29 = arith.constant 0 : index
    %c0_30 = arith.constant 0 : index
    %26 = vector.load %arg2[%c0_29, %c0_30] : memref<16x112xbf16, #tpu.memory_space<vmem>>, vector<16x112xbf16>
    %c0_31 = arith.constant 0 : index
    %c0_32 = arith.constant 0 : index
    %27 = vector.load %arg9[%c0_31, %c0_32] : memref<336x16xbf16, #tpu.memory_space<vmem>>, vector<112x16xbf16>
    %cst_33 = arith.constant dense<0.000000e+00> : vector<16x16xf32>
    %28 = tpu.matmul %26, %27, %cst_33 {dimension_numbers = #tpu.dot_dimension_numbers<[1], [0], [0], [1], [0, 0, 1, 1], [], []>} : vector<16x112xbf16>, vector<112x16xbf16>, vector<16x16xf32> -> vector<16x16xf32>
    %c0_34 = arith.constant 0 : index
    %c0_35 = arith.constant 0 : index
    %29 = vector.load %arg3[%c0_34, %c0_35] : memref<16x1xf32, #tpu.memory_space<vmem>>, vector<16x1xf32>
    %30 = vector.broadcast %29 : vector<16x1xf32> to vector<16x16xf32>
    %31 = arith.addf %28, %30 : vector<16x16xf32>
    %cst_36 = arith.constant 0.000000e+00 : f32
    %32 = vector.broadcast %cst_36 : f32 to vector<16x16xf32>
    %33 = arith.maximumf %31, %32 : vector<16x16xf32>
    %34 = vector.extract_strided_slice %33 {offsets = [0, 0], sizes = [4, 16], strides = [1, 1]} : vector<16x16xf32> to vector<4x16xf32>
    %c0_37 = arith.constant 0 : index
    %c4_38 = arith.constant 4 : index
    %c0_39 = arith.constant 0 : index
    %35 = vector.load %arg8[%c0_37, %c4_38, %c0_39] : memref<1x16x16xf32, #tpu.memory_space<vmem>>, vector<1x4x16xf32>
    %36 = vector.shape_cast %35 : vector<1x4x16xf32> to vector<4x16xf32>
    %37 = vector.shape_cast %34 : vector<4x16xf32> to vector<1x4x16xf32>
    tpu.vector_store %arg8[%c0_37, %c4_38, %c0_39], %37 {strides = array<i32>} : memref<1x16x16xf32, #tpu.memory_space<vmem>>, vector<1x4x16xf32>,
    %38 = arith.truncf %33 : vector<16x16xf32> to vector<16x16xbf16>
    %c0_40 = arith.constant 0 : index
    %c3_41 = arith.constant 3 : index
    %39 = vector.load %arg10[%c0_40, %c3_41] : memref<16x22xbf16, #tpu.memory_space<vmem>>, vector<16x16xbf16>
    tpu.vector_store %arg10[%c0_40, %c3_41], %38 {strides = array<i32>} : memref<16x22xbf16, #tpu.memory_space<vmem>>, vector<16x16xbf16>,
    %c0_42 = arith.constant 0 : index
    %c0_43 = arith.constant 0 : index
    %40 = vector.load %arg10[%c0_42, %c0_43] : memref<16x22xbf16, #tpu.memory_space<vmem>>, vector<16x16xbf16>
    %c112 = arith.constant 112 : index
    %c0_44 = arith.constant 0 : index
    %41 = vector.load %arg9[%c112, %c0_44] : memref<336x16xbf16, #tpu.memory_space<vmem>>, vector<16x16xbf16>
    tpu.vector_store %arg9[%c112, %c0_44], %40 {strides = array<i32>} : memref<336x16xbf16, #tpu.memory_space<vmem>>, vector<16x16xbf16>,
    %c0_45 = arith.constant 0 : index
    %c1_46 = arith.constant 1 : index
    %42 = vector.load %arg10[%c0_45, %c1_46] : memref<16x22xbf16, #tpu.memory_space<vmem>>, vector<16x16xbf16>
    %c128 = arith.constant 128 : index
    %c0_47 = arith.constant 0 : index
    %43 = vector.load %arg9[%c128, %c0_47] : memref<336x16xbf16, #tpu.memory_space<vmem>>, vector<16x16xbf16>
    tpu.vector_store %arg9[%c128, %c0_47], %42 {strides = array<i32>} : memref<336x16xbf16, #tpu.memory_space<vmem>>, vector<16x16xbf16>,
    %c0_48 = arith.constant 0 : index
    %c2_49 = arith.constant 2 : index
    %44 = vector.load %arg10[%c0_48, %c2_49] : memref<16x22xbf16, #tpu.memory_space<vmem>>, vector<16x16xbf16>
    %c144 = arith.constant 144 : index
    %c0_50 = arith.constant 0 : index
    %45 = vector.load %arg9[%c144, %c0_50] : memref<336x16xbf16, #tpu.memory_space<vmem>>, vector<16x16xbf16>
    tpu.vector_store %arg9[%c144, %c0_50], %44 {strides = array<i32>} : memref<336x16xbf16, #tpu.memory_space<vmem>>, vector<16x16xbf16>,
    %c0_51 = arith.constant 0 : index
    %c3_52 = arith.constant 3 : index
    %46 = vector.load %arg10[%c0_51, %c3_52] : memref<16x22xbf16, #tpu.memory_space<vmem>>, vector<16x16xbf16>
    %c160 = arith.constant 160 : index
    %c0_53 = arith.constant 0 : index
    %47 = vector.load %arg9[%c160, %c0_53] : memref<336x16xbf16, #tpu.memory_space<vmem>>, vector<16x16xbf16>
    tpu.vector_store %arg9[%c160, %c0_53], %46 {strides = array<i32>} : memref<336x16xbf16, #tpu.memory_space<vmem>>, vector<16x16xbf16>,
    %c0_54 = arith.constant 0 : index
    %c4_55 = arith.constant 4 : index
    %48 = vector.load %arg10[%c0_54, %c4_55] : memref<16x22xbf16, #tpu.memory_space<vmem>>, vector<16x16xbf16>
    %c176 = arith.constant 176 : index
    %c0_56 = arith.constant 0 : index
    %49 = vector.load %arg9[%c176, %c0_56] : memref<336x16xbf16, #tpu.memory_space<vmem>>, vector<16x16xbf16>
    tpu.vector_store %arg9[%c176, %c0_56], %48 {strides = array<i32>} : memref<336x16xbf16, #tpu.memory_space<vmem>>, vector<16x16xbf16>,
    %c0_57 = arith.constant 0 : index
    %c5_58 = arith.constant 5 : index
    %50 = vector.load %arg10[%c0_57, %c5_58] : memref<16x22xbf16, #tpu.memory_space<vmem>>, vector<16x16xbf16>
    %c192 = arith.constant 192 : index
    %c0_59 = arith.constant 0 : index
    %51 = vector.load %arg9[%c192, %c0_59] : memref<336x16xbf16, #tpu.memory_space<vmem>>, vector<16x16xbf16>
    tpu.vector_store %arg9[%c192, %c0_59], %50 {strides = array<i32>} : memref<336x16xbf16, #tpu.memory_space<vmem>>, vector<16x16xbf16>,
    %c0_60 = arith.constant 0 : index
    %c6_61 = arith.constant 6 : index
    %52 = vector.load %arg10[%c0_60, %c6_61] : memref<16x22xbf16, #tpu.memory_space<vmem>>, vector<16x16xbf16>
    %c208 = arith.constant 208 : index
    %c0_62 = arith.constant 0 : index
    %53 = vector.load %arg9[%c208, %c0_62] : memref<336x16xbf16, #tpu.memory_space<vmem>>, vector<16x16xbf16>
    tpu.vector_store %arg9[%c208, %c0_62], %52 {strides = array<i32>} : memref<336x16xbf16, #tpu.memory_space<vmem>>, vector<16x16xbf16>,
    %c0_63 = arith.constant 0 : index
    %c0_64 = arith.constant 0 : index
    %54 = vector.load %arg4[%c0_63, %c0_64] : memref<16x224xbf16, #tpu.memory_space<vmem>>, vector<16x224xbf16>
    %c0_65 = arith.constant 0 : index
    %c0_66 = arith.constant 0 : index
    %55 = vector.load %arg9[%c0_65, %c0_66] : memref<336x16xbf16, #tpu.memory_space<vmem>>, vector<224x16xbf16>
    %cst_67 = arith.constant dense<0.000000e+00> : vector<16x16xf32>
    %56 = tpu.matmul %54, %55, %cst_67 {dimension_numbers = #tpu.dot_dimension_numbers<[1], [0], [0], [1], [0, 0, 1, 1], [], []>} : vector<16x224xbf16>, vector<224x16xbf16>, vector<16x16xf32> -> vector<16x16xf32>
    %c0_68 = arith.constant 0 : index
    %c0_69 = arith.constant 0 : index
    %57 = vector.load %arg5[%c0_68, %c0_69] : memref<16x1xf32, #tpu.memory_space<vmem>>, vector<16x1xf32>
    %58 = vector.broadcast %57 : vector<16x1xf32> to vector<16x16xf32>
    %59 = arith.addf %56, %58 : vector<16x16xf32>
    %cst_70 = arith.constant 0.000000e+00 : f32
    %60 = vector.broadcast %cst_70 : f32 to vector<16x16xf32>
    %61 = arith.maximumf %59, %60 : vector<16x16xf32>
    %62 = vector.extract_strided_slice %61 {offsets = [0, 0], sizes = [4, 16], strides = [1, 1]} : vector<16x16xf32> to vector<4x16xf32>
    %c0_71 = arith.constant 0 : index
    %c8 = arith.constant 8 : index
    %c0_72 = arith.constant 0 : index
    %63 = vector.load %arg8[%c0_71, %c8, %c0_72] : memref<1x16x16xf32, #tpu.memory_space<vmem>>, vector<1x4x16xf32>
    %64 = vector.shape_cast %63 : vector<1x4x16xf32> to vector<4x16xf32>
    %65 = vector.shape_cast %62 : vector<4x16xf32> to vector<1x4x16xf32>
    tpu.vector_store %arg8[%c0_71, %c8, %c0_72], %65 {strides = array<i32>} : memref<1x16x16xf32, #tpu.memory_space<vmem>>, vector<1x4x16xf32>,
    %66 = arith.truncf %61 : vector<16x16xf32> to vector<16x16xbf16>
    %c0_73 = arith.constant 0 : index
    %c3_74 = arith.constant 3 : index
    %67 = vector.load %arg10[%c0_73, %c3_74] : memref<16x22xbf16, #tpu.memory_space<vmem>>, vector<16x16xbf16>
    tpu.vector_store %arg10[%c0_73, %c3_74], %66 {strides = array<i32>} : memref<16x22xbf16, #tpu.memory_space<vmem>>, vector<16x16xbf16>,
    %c0_75 = arith.constant 0 : index
    %c0_76 = arith.constant 0 : index
    %68 = vector.load %arg10[%c0_75, %c0_76] : memref<16x22xbf16, #tpu.memory_space<vmem>>, vector<16x16xbf16>
    %c224 = arith.constant 224 : index
    %c0_77 = arith.constant 0 : index
    %69 = vector.load %arg9[%c224, %c0_77] : memref<336x16xbf16, #tpu.memory_space<vmem>>, vector<16x16xbf16>
    tpu.vector_store %arg9[%c224, %c0_77], %68 {strides = array<i32>} : memref<336x16xbf16, #tpu.memory_space<vmem>>, vector<16x16xbf16>,
    %c0_78 = arith.constant 0 : index
    %c1_79 = arith.constant 1 : index
    %70 = vector.load %arg10[%c0_78, %c1_79] : memref<16x22xbf16, #tpu.memory_space<vmem>>, vector<16x16xbf16>
    %c240 = arith.constant 240 : index
    %c0_80 = arith.constant 0 : index
    %71 = vector.load %arg9[%c240, %c0_80] : memref<336x16xbf16, #tpu.memory_space<vmem>>, vector<16x16xbf16>
    tpu.vector_store %arg9[%c240, %c0_80], %70 {strides = array<i32>} : memref<336x16xbf16, #tpu.memory_space<vmem>>, vector<16x16xbf16>,
    %c0_81 = arith.constant 0 : index
    %c2_82 = arith.constant 2 : index
    %72 = vector.load %arg10[%c0_81, %c2_82] : memref<16x22xbf16, #tpu.memory_space<vmem>>, vector<16x16xbf16>
    %c256 = arith.constant 256 : index
    %c0_83 = arith.constant 0 : index
    %73 = vector.load %arg9[%c256, %c0_83] : memref<336x16xbf16, #tpu.memory_space<vmem>>, vector<16x16xbf16>
    tpu.vector_store %arg9[%c256, %c0_83], %72 {strides = array<i32>} : memref<336x16xbf16, #tpu.memory_space<vmem>>, vector<16x16xbf16>,
    %c0_84 = arith.constant 0 : index
    %c3_85 = arith.constant 3 : index
    %74 = vector.load %arg10[%c0_84, %c3_85] : memref<16x22xbf16, #tpu.memory_space<vmem>>, vector<16x16xbf16>
    %c272 = arith.constant 272 : index
    %c0_86 = arith.constant 0 : index
    %75 = vector.load %arg9[%c272, %c0_86] : memref<336x16xbf16, #tpu.memory_space<vmem>>, vector<16x16xbf16>
    tpu.vector_store %arg9[%c272, %c0_86], %74 {strides = array<i32>} : memref<336x16xbf16, #tpu.memory_space<vmem>>, vector<16x16xbf16>,
    %c0_87 = arith.constant 0 : index
    %c4_88 = arith.constant 4 : index
    %76 = vector.load %arg10[%c0_87, %c4_88] : memref<16x22xbf16, #tpu.memory_space<vmem>>, vector<16x16xbf16>
    %c288 = arith.constant 288 : index
    %c0_89 = arith.constant 0 : index
    %77 = vector.load %arg9[%c288, %c0_89] : memref<336x16xbf16, #tpu.memory_space<vmem>>, vector<16x16xbf16>
    tpu.vector_store %arg9[%c288, %c0_89], %76 {strides = array<i32>} : memref<336x16xbf16, #tpu.memory_space<vmem>>, vector<16x16xbf16>,
    %c0_90 = arith.constant 0 : index
    %c5_91 = arith.constant 5 : index
    %78 = vector.load %arg10[%c0_90, %c5_91] : memref<16x22xbf16, #tpu.memory_space<vmem>>, vector<16x16xbf16>
    %c304 = arith.constant 304 : index
    %c0_92 = arith.constant 0 : index
    %79 = vector.load %arg9[%c304, %c0_92] : memref<336x16xbf16, #tpu.memory_space<vmem>>, vector<16x16xbf16>
    tpu.vector_store %arg9[%c304, %c0_92], %78 {strides = array<i32>} : memref<336x16xbf16, #tpu.memory_space<vmem>>, vector<16x16xbf16>,
    %c0_93 = arith.constant 0 : index
    %c6_94 = arith.constant 6 : index
    %80 = vector.load %arg10[%c0_93, %c6_94] : memref<16x22xbf16, #tpu.memory_space<vmem>>, vector<16x16xbf16>
    %c320 = arith.constant 320 : index
    %c0_95 = arith.constant 0 : index
    %81 = vector.load %arg9[%c320, %c0_95] : memref<336x16xbf16, #tpu.memory_space<vmem>>, vector<16x16xbf16>
    tpu.vector_store %arg9[%c320, %c0_95], %80 {strides = array<i32>} : memref<336x16xbf16, #tpu.memory_space<vmem>>, vector<16x16xbf16>,
    %c0_96 = arith.constant 0 : index
    %c0_97 = arith.constant 0 : index
    %82 = vector.load %arg6[%c0_96, %c0_97] : memref<16x336xbf16, #tpu.memory_space<vmem>>, vector<16x336xbf16>
    %c0_98 = arith.constant 0 : index
    %c0_99 = arith.constant 0 : index
    %83 = vector.load %arg9[%c0_98, %c0_99] : memref<336x16xbf16, #tpu.memory_space<vmem>>, vector<336x16xbf16>
    %cst_100 = arith.constant dense<0.000000e+00> : vector<16x16xf32>
    %84 = tpu.matmul %82, %83, %cst_100 {dimension_numbers = #tpu.dot_dimension_numbers<[1], [0], [0], [1], [0, 0, 1, 1], [], []>} : vector<16x336xbf16>, vector<336x16xbf16>, vector<16x16xf32> -> vector<16x16xf32>
    %c0_101 = arith.constant 0 : index
    %c0_102 = arith.constant 0 : index
    %85 = vector.load %arg7[%c0_101, %c0_102] : memref<16x1xf32, #tpu.memory_space<vmem>>, vector<16x1xf32>
    %86 = vector.broadcast %85 : vector<16x1xf32> to vector<16x16xf32>
    %87 = arith.addf %84, %86 : vector<16x16xf32>
    %cst_103 = arith.constant 0.000000e+00 : f32
    %88 = vector.broadcast %cst_103 : f32 to vector<16x16xf32>
    %89 = arith.maximumf %87, %88 : vector<16x16xf32>
    %90 = vector.extract_strided_slice %89 {offsets = [0, 0], sizes = [4, 16], strides = [1, 1]} : vector<16x16xf32> to vector<4x16xf32>
    %c0_104 = arith.constant 0 : index
    %c12 = arith.constant 12 : index
    %c0_105 = arith.constant 0 : index
    %91 = vector.load %arg8[%c0_104, %c12, %c0_105] : memref<1x16x16xf32, #tpu.memory_space<vmem>>, vector<1x4x16xf32>
    %92 = vector.shape_cast %91 : vector<1x4x16xf32> to vector<4x16xf32>
    %93 = vector.shape_cast %90 : vector<4x16xf32> to vector<1x4x16xf32>
    tpu.vector_store %arg8[%c0_104, %c12, %c0_105], %93 {strides = array<i32>} : memref<1x16x16xf32, #tpu.memory_space<vmem>>, vector<1x4x16xf32>,
    return
  }
  func.func @transform_0(%arg0: i32) -> (i32, i32, i32) {
    %c0_i32 = arith.constant 0 : i32
    %c0_i32_0 = arith.constant 0 : i32
    %c0_i32_1 = arith.constant 0 : i32
    return %arg0, %c0_i32, %c0_i32_0 : i32, i32, i32
  }
  func.func @transform_1(%arg0: i32) -> (i32, i32) {
    %c0_i32 = arith.constant 0 : i32
    %c0_i32_0 = arith.constant 0 : i32
    %c0_i32_1 = arith.constant 0 : i32
    return %c0_i32, %c0_i32_0 : i32, i32
  }
  func.func @transform_2(%arg0: i32) -> (i32, i32) {
    %c0_i32 = arith.constant 0 : i32
    %c0_i32_0 = arith.constant 0 : i32
    %c0_i32_1 = arith.constant 0 : i32
    return %c0_i32, %c0_i32_0 : i32, i32
  }
  func.func @transform_3(%arg0: i32) -> (i32, i32) {
    %c0_i32 = arith.constant 0 : i32
    %c0_i32_0 = arith.constant 0 : i32
    %c0_i32_1 = arith.constant 0 : i32
    return %c0_i32, %c0_i32_0 : i32, i32
  }
  func.func @transform_4(%arg0: i32) -> (i32, i32) {
    %c0_i32 = arith.constant 0 : i32
    %c0_i32_0 = arith.constant 0 : i32
    %c0_i32_1 = arith.constant 0 : i32
    return %c0_i32, %c0_i32_0 : i32, i32
  }
  func.func @transform_5(%arg0: i32) -> (i32, i32) {
    %c0_i32 = arith.constant 0 : i32
    %c0_i32_0 = arith.constant 0 : i32
    %c0_i32_1 = arith.constant 0 : i32
    return %c0_i32, %c0_i32_0 : i32, i32
  }
  func.func @transform_6(%arg0: i32) -> (i32, i32) {
    %c0_i32 = arith.constant 0 : i32
    %c0_i32_0 = arith.constant 0 : i32
    %c0_i32_1 = arith.constant 0 : i32
    return %c0_i32, %c0_i32_0 : i32, i32
  }
  func.func @transform_7(%arg0: i32) -> (i32, i32, i32) {
    %c0_i32 = arith.constant 0 : i32
    %c0_i32_0 = arith.constant 0 : i32
    %c0_i32_1 = arith.constant 0 : i32
    return %arg0, %c0_i32, %c0_i32_0 : i32, i32, i32
  }
}

</mosaic_0001>

<llo_original>
// kernel: tpu_custom_call.1
$region0: #{tpu_custom_call.1}
  #allocation0 [shape = 'u32[]', space=smem, size = 0x4, offset = 0x4, fixed_abs, tag = 'smem constant byte address 0x4 - core index']
  #allocation1 [shape = 'u32[144,128]{1,0:T(1,128)}', space=vmem, size = 0x12000, scoped, tag = 'internal scratch']
  #allocation2 [shape = 'bf16[336,16]{1,0:T(16,128)(2,1)}', space=vmem, size = 0x15000, scoped, tag = 'scratch operand']
  #allocation3 [shape = 'bf16[16,22]{1,0:T(16,128)(2,1)}', space=vmem, size = 0x1000, scoped, tag = 'scratch operand']
  %s0 = inlined_call_operand.vmem [shape: f32[2,16,16], index: 0, kind: input, shape index: {}]
  %s1 = inlined_call_operand.hbm [shape: bf16[16,112], index: 1, kind: input, shape index: {}]
  %s2 = inlined_call_operand.vmem [shape: f32[16,1], index: 2, kind: input, shape index: {}]
  %s3 = inlined_call_operand.hbm [shape: bf16[16,224], index: 3, kind: input, shape index: {}]
  %s4 = inlined_call_operand.vmem [shape: f32[16,1], index: 4, kind: input, shape index: {}]
  %s5 = inlined_call_operand.vmem [shape: bf16[16,336], index: 5, kind: input, shape index: {}]
  %s6 = inlined_call_operand.vmem [shape: f32[16,1], index: 6, kind: input, shape index: {}]
  %s7 = inlined_call_operand.hbm [shape: f32[2,16,16], index: 7, kind: output, shape index: {}]
  %s8 = sld [smem:[#allocation0]]
  $region69: #{tpu_custom_call.1} parent=0
    _
  %s10 = ssub.s32 1, %s8
  %s11 = scalar_select 0, %s10, %s8
  $region1: #{tpu_custom_call.1} parent=0
    #allocation4 [shape = 'u8[4096]{0}', space=vmem, size = 0x1000, scoped, tag = 'input window, operand 1, single buffered']
    #allocation5 [shape = 's32[2]{0}', space=sflag, size = 0x8, scoped, tag = 'scoped memory for tpu_custom_call.1']
    #allocation6 [shape = 's32[2]{0}', space=sflag, size = 0x8, scoped, tag = 'scoped memory for tpu_custom_call.1']
    #allocation7 [shape = 'u8[8192]{0}', space=vmem, size = 0x2000, scoped, tag = 'input window, operand 3, single buffered']
    #allocation8 [shape = 's32[1]{0}', space=sflag, size = 0x4, scoped, tag = 'scoped memory for tpu_custom_call.1']
    #allocation9 [shape = 'u8[16384]{0}', space=vmem, size = 0x4000, scoped, tag = 'output window, operand 0']
    %12 = vsyncpa [#allocation5], 0
    %13 = vsyncpa [#allocation8], 0
    %14 = vsyncpa [#allocation6], 0
    %s15 = scalar_lea.sflag [#allocation6], 1
    %16 = vsyncpa %s15, 0
    loop: start=0, step=1, limit=4
    $region2: #{tpu_custom_call.1} parent=1 // loop_pre_header
      _
    $region3: #{tpu_custom_call.1} parent=1 // loop_header
      %s18 = sphi 0, %s22
      %p19 = scmp.ge.s32.totalorder %s18, 4
      %s28 = sphi 0, %s30
      %s31 = sphi 0, %s28
      %s32 = sphi 0, %s31
      %s48 = sphi 0, %s32
      %s52 = sphi 0, %s52
      %s54 = sphi 0, %s52
      %s55 = sphi 0, %s54
      %s69 = sphi 0, %s55
      %s73 = sphi 0, %s73
      %s75 = sphi 0, %s73
      %s76 = sphi 0, %s75
      %s90 = sphi 0, %s76
      %s94 = sphi 0, %s94
      %s96 = sphi 0, %s94
      %s97 = sphi 0, %s96
      %s111 = sphi 0, %s97
      %s115 = sphi 0, %s115
      %s117 = sphi 0, %s115
      %s118 = sphi 0, %s117
      %s132 = sphi 0, %s118
      %s136 = sphi 0, %s136
      %s138 = sphi 0, %s136
      %s139 = sphi 0, %s138
      %s153 = sphi 0, %s139
      %s157 = sphi 0, %s157
      %s159 = sphi 0, %s157
      %s160 = sphi 0, %s159
      %s174 = sphi 0, %s160
      %s180 = sphi 0, %s182
      %s183 = sphi 0, %s180
      %s184 = sphi 0, %s183
      %s200 = sphi 0, %s184
    $region4: #{tpu_custom_call.1} parent=1 // loop_header_branch
      %21 = sbr.rel (%p19) target = $region8
    $region5: #{tpu_custom_call.1} parent=1 // loop_body
      %s23 = ssub.s32 %s18, 1
      %s24 = ssub.s32 %s18, 2
      %s25 = sadd.s32 %s18, 1
      %s26 = ssub.s32 %s18, %s25
      %p27 = scmp.eq.s32.totalorder %s26, 0
      %s29 = sadd.s32 %s28, 1
      %s30 = scalar_select %p27, %s28, %s29
      %p33 = pneg %p27
      %p34 = scmp.eq.s32.totalorder %s18, 1
      %p35 = por %p33, %p34
      %p36 = scmp.ne.s32.totalorder %s28, %s31
      %p37 = scmp.eq.s32.totalorder %s18, 0
      %p38 = por %p36, %p37
      %p39 = scmp.ne.s32.totalorder %s28, %s31
      %p40 = scmp.eq.s32.totalorder %s23, 1
      %p41 = por %p39, %p40
      %p42 = scmp.ne.s32.totalorder %s31, %s32
      %p43 = scmp.eq.s32.totalorder %s23, 0
      %p44 = por %p42, %p43
      %p45 = scmp.ne.s32.totalorder %s31, %s32
      %p46 = scmp.eq.s32.totalorder %s24, 1
      %p47 = por %p45, %p46
      %p49 = scmp.ne.s32.totalorder %s32, %s48
      %p50 = scmp.eq.s32.totalorder %s24, 0
      %p51 = por %p49, %p50
      %s53 = sadd.s32 %s52, 1
      %p56 = scmp.eq.s32.totalorder %s18, 1
      %p57 = scmp.ne.s32.totalorder %s52, %s54
      %p58 = scmp.eq.s32.totalorder %s18, 0
      %p59 = por %p57, %p58
      %p60 = scmp.ne.s32.totalorder %s52, %s54
      %p61 = scmp.eq.s32.totalorder %s23, 1
      %p62 = por %p60, %p61
      %p63 = scmp.ne.s32.totalorder %s54, %s55
      %p64 = scmp.eq.s32.totalorder %s23, 0
      %p65 = por %p63, %p64
      %p66 = scmp.ne.s32.totalorder %s54, %s55
      %p67 = scmp.eq.s32.totalorder %s24, 1
      %p68 = por %p66, %p67
      %p70 = scmp.ne.s32.totalorder %s55, %s69
      %p71 = scmp.eq.s32.totalorder %s24, 0
      %p72 = por %p70, %p71
      %s74 = sadd.s32 %s73, 1
      %p77 = scmp.eq.s32.totalorder %s18, 1
      %p78 = scmp.ne.s32.totalorder %s73, %s75
      %p79 = scmp.eq.s32.totalorder %s18, 0
      %p80 = por %p78, %p79
      %p81 = scmp.ne.s32.totalorder %s73, %s75
      %p82 = scmp.eq.s32.totalorder %s23, 1
      %p83 = por %p81, %p82
      %p84 = scmp.ne.s32.totalorder %s75, %s76
      %p85 = scmp.eq.s32.totalorder %s23, 0
      %p86 = por %p84, %p85
      %p87 = scmp.ne.s32.totalorder %s75, %s76
      %p88 = scmp.eq.s32.totalorder %s24, 1
      %p89 = por %p87, %p88
      %p91 = scmp.ne.s32.totalorder %s76, %s90
      %p92 = scmp.eq.s32.totalorder %s24, 0
      %p93 = por %p91, %p92
      %s95 = sadd.s32 %s94, 1
      %p98 = scmp.eq.s32.totalorder %s18, 1
      %p99 = scmp.ne.s32.totalorder %s94, %s96
      %p100 = scmp.eq.s32.totalorder %s18, 0
      %p101 = por %p99, %p100
      %p102 = scmp.ne.s32.totalorder %s94, %s96
      %p103 = scmp.eq.s32.totalorder %s23, 1
      %p104 = por %p102, %p103
      %p105 = scmp.ne.s32.totalorder %s96, %s97
      %p106 = scmp.eq.s32.totalorder %s23, 0
      %p107 = por %p105, %p106
      %p108 = scmp.ne.s32.totalorder %s96, %s97
      %p109 = scmp.eq.s32.totalorder %s24, 1
      %p110 = por %p108, %p109
      %p112 = scmp.ne.s32.totalorder %s97, %s111
      %p113 = scmp.eq.s32.totalorder %s24, 0
      %p114 = por %p112, %p113
      %s116 = sadd.s32 %s115, 1
      %p119 = scmp.eq.s32.totalorder %s18, 1
      %p120 = scmp.ne.s32.totalorder %s115, %s117
      %p121 = scmp.eq.s32.totalorder %s18, 0
      %p122 = por %p120, %p121
      %p123 = scmp.ne.s32.totalorder %s115, %s117
      %p124 = scmp.eq.s32.totalorder %s23, 1
      %p125 = por %p123, %p124
      %p126 = scmp.ne.s32.totalorder %s117, %s118
      %p127 = scmp.eq.s32.totalorder %s23, 0
      %p128 = por %p126, %p127
      %p129 = scmp.ne.s32.totalorder %s117, %s118
      %p130 = scmp.eq.s32.totalorder %s24, 1
      %p131 = por %p129, %p130
      %p133 = scmp.ne.s32.totalorder %s118, %s132
      %p134 = scmp.eq.s32.totalorder %s24, 0
      %p135 = por %p133, %p134
      %s137 = sadd.s32 %s136, 1
      %p140 = scmp.eq.s32.totalorder %s18, 1
      %p141 = scmp.ne.s32.totalorder %s136, %s138
      %p142 = scmp.eq.s32.totalorder %s18, 0
      %p143 = por %p141, %p142
      %p144 = scmp.ne.s32.totalorder %s136, %s138
      %p145 = scmp.eq.s32.totalorder %s23, 1
      %p146 = por %p144, %p145
      %p147 = scmp.ne.s32.totalorder %s138, %s139
      %p148 = scmp.eq.s32.totalorder %s23, 0
      %p149 = por %p147, %p148
      %p150 = scmp.ne.s32.totalorder %s138, %s139
      %p151 = scmp.eq.s32.totalorder %s24, 1
      %p152 = por %p150, %p151
      %p154 = scmp.ne.s32.totalorder %s139, %s153
      %p155 = scmp.eq.s32.totalorder %s24, 0
      %p156 = por %p154, %p155
      %s158 = sadd.s32 %s157, 1
      %p161 = scmp.eq.s32.totalorder %s18, 1
      %p162 = scmp.ne.s32.totalorder %s157, %s159
      %p163 = scmp.eq.s32.totalorder %s18, 0
      %p164 = por %p162, %p163
      %p165 = scmp.ne.s32.totalorder %s157, %s159
      %p166 = scmp.eq.s32.totalorder %s23, 1
      %p167 = por %p165, %p166
      %p168 = scmp.ne.s32.totalorder %s159, %s160
      %p169 = scmp.eq.s32.totalorder %s23, 0
      %p170 = por %p168, %p169
      %p171 = scmp.ne.s32.totalorder %s159, %s160
      %p172 = scmp.eq.s32.totalorder %s24, 1
      %p173 = por %p171, %p172
      %p175 = scmp.ne.s32.totalorder %s160, %s174
      %p176 = scmp.eq.s32.totalorder %s24, 0
      %p177 = por %p175, %p176
      %s178 = ssub.s32 %s18, %s25
      %p179 = scmp.eq.s32.totalorder %s178, 0
      %s181 = sadd.s32 %s180, 1
      %s182 = scalar_select %p179, %s180, %s181
      %p185 = pneg %p179
      %p186 = scmp.eq.s32.totalorder %s18, 1
      %p187 = por %p185, %p186
      %p188 = scmp.ne.s32.totalorder %s180, %s183
      %p189 = scmp.eq.s32.totalorder %s18, 0
      %p190 = por %p188, %p189
      %p191 = scmp.ne.s32.totalorder %s180, %s183
      %p192 = scmp.eq.s32.totalorder %s23, 1
      %p193 = por %p191, %p192
      %p194 = scmp.ne.s32.totalorder %s183, %s184
      %p195 = scmp.eq.s32.totalorder %s23, 0
      %p196 = por %p194, %p195
      %p197 = scmp.ne.s32.totalorder %s183, %s184
      %p198 = scmp.eq.s32.totalorder %s24, 1
      %p199 = por %p197, %p198
      %p201 = scmp.ne.s32.totalorder %s184, %s200
      %p202 = scmp.eq.s32.totalorder %s24, 0
      %p203 = por %p201, %p202
      %p204 = scmp.le.s32.totalorder 1, %s18
      %p205 = scmp.lt.s32.totalorder %s18, 3
      %p206 = pnand %p204, %p205
      %p207 = pneg %p206
      // Predicated region
      $region9: #{tpu_custom_call.1} parent=5 // pred_check
        _
      $region10: #{tpu_custom_call.1} parent=5 // pred_check_branch
        %209 = sbr.rel (%p206) target = $region12
      $region11: #{tpu_custom_call.1} parent=5 // pred_region
        %s210 = ssub.s32 %s18, 1
        // Predicated region
        $region13: #{tpu_custom_call.1} parent=11 // pred_check
          %p211 = pneg %p65
        $region14: #{tpu_custom_call.1} parent=11 // pred_check_branch
          %213 = sbr.rel (%p211) target = $region16
        $region15: #{tpu_custom_call.1} parent=11 // pred_region
          %s215 = ssub.s32 128, 128
          %216 = vsyncadd [#allocation5], %s215
          %s217 = sshll.u32 [#allocation4], 4
          %s218 = int_to_ptr.vmem [resolvable:$true] %s217
          %223 = dma.hbm_to_vmem [thread:$0]  %s1, 128, %s218, [#allocation5], 64, 64, 4
        $region16: #{tpu_custom_call.1} parent=11 // pred_fallthru
          _
        // Predicated region
        $region17: #{tpu_custom_call.1} parent=11 // pred_check
          %p224 = pneg %p86
        $region18: #{tpu_custom_call.1} parent=11 // pred_check_branch
          %226 = sbr.rel (%p224) target = $region20
        $region19: #{tpu_custom_call.1} parent=11 // pred_region
          _
        $region20: #{tpu_custom_call.1} parent=11 // pred_fallthru
          _
        // Predicated region
        $region21: #{tpu_custom_call.1} parent=11 // pred_check
          %p227 = pneg %p107
        $region22: #{tpu_custom_call.1} parent=11 // pred_check_branch
          %229 = sbr.rel (%p227) target = $region24
        $region23: #{tpu_custom_call.1} parent=11 // pred_region
          %s231 = ssub.s32 256, 256
          %232 = vsyncadd [#allocation8], %s231
          %s233 = sshll.u32 [#allocation7], 4
          %s234 = int_to_ptr.vmem [resolvable:$true] %s233
          %239 = dma.hbm_to_vmem [thread:$0]  %s3, 256, %s234, [#allocation8], 128, 128, 8
        $region24: #{tpu_custom_call.1} parent=11 // pred_fallthru
          _
        // Predicated region
        $region25: #{tpu_custom_call.1} parent=11 // pred_check
          %p240 = pneg %p128
        $region26: #{tpu_custom_call.1} parent=11 // pred_check_branch
          %242 = sbr.rel (%p240) target = $region28
        $region27: #{tpu_custom_call.1} parent=11 // pred_region
          _
        $region28: #{tpu_custom_call.1} parent=11 // pred_fallthru
          _
        // Predicated region
        $region29: #{tpu_custom_call.1} parent=11 // pred_check
          %p243 = pneg %p149
        $region30: #{tpu_custom_call.1} parent=11 // pred_check_branch
          %245 = sbr.rel (%p243) target = $region32
        $region31: #{tpu_custom_call.1} parent=11 // pred_region
          _
        $region32: #{tpu_custom_call.1} parent=11 // pred_fallthru
          _
        // Predicated region
        $region33: #{tpu_custom_call.1} parent=11 // pred_check
          %p246 = pneg %p170
        $region34: #{tpu_custom_call.1} parent=11 // pred_check_branch
          %248 = sbr.rel (%p246) target = $region36
        $region35: #{tpu_custom_call.1} parent=11 // pred_region
          _
        $region36: #{tpu_custom_call.1} parent=11 // pred_fallthru
          _
      $region12: #{tpu_custom_call.1} parent=5 // pred_fallthru
        _
      %p249 = scmp.lt.s32.totalorder %s18, 2
      // Predicated region
      $region37: #{tpu_custom_call.1} parent=5 // pred_check
        %p250 = pneg %p249
      $region38: #{tpu_custom_call.1} parent=5 // pred_check_branch
        %252 = sbr.rel (%p250) target = $region40
      $region39: #{tpu_custom_call.1} parent=5 // pred_region
        // Predicated region
        $region41: #{tpu_custom_call.1} parent=39 // pred_check
          %p253 = pneg %p38
        $region42: #{tpu_custom_call.1} parent=39 // pred_check_branch
          %255 = sbr.rel (%p253) target = $region44
        $region43: #{tpu_custom_call.1} parent=39 // pred_region
          %p256 = scmp.lt.s32.totalorder %s18, 1
          %s257 = scalar_select %p256, %s18, 1
          %s258 = smul.addr %s257, 2
          %s259 = smul.addr %s258, 8
          %s260 = scalar_lea.vmem %s0, %s259
        $region44: #{tpu_custom_call.1} parent=39 // pred_fallthru
          _
      $region40: #{tpu_custom_call.1} parent=5 // pred_fallthru
        _
      %p261 = scmp.le.s32.totalorder 1, %s18
      %p262 = scmp.lt.s32.totalorder %s18, 3
      %p263 = pnand %p261, %p262
      %p264 = pneg %p263
      // Predicated region
      $region45: #{tpu_custom_call.1} parent=5 // pred_check
        _
      $region46: #{tpu_custom_call.1} parent=5 // pred_check_branch
        %266 = sbr.rel (%p263) target = $region48
      $region47: #{tpu_custom_call.1} parent=5 // pred_region
        %s267 = ssub.s32 %s18, 1
        // Predicated region
        $region49: #{tpu_custom_call.1} parent=47 // pred_check
          %p268 = pneg %p65
        $region50: #{tpu_custom_call.1} parent=47 // pred_check_branch
          %270 = sbr.rel (%p268) target = $region52
        $region51: #{tpu_custom_call.1} parent=47 // pred_region
          %271 = dma.done [#allocation5], 128
        $region52: #{tpu_custom_call.1} parent=47 // pred_fallthru
          _
        // Predicated region
        $region53: #{tpu_custom_call.1} parent=47 // pred_check
          %p272 = pneg %p107
        $region54: #{tpu_custom_call.1} parent=47 // pred_check_branch
          %274 = sbr.rel (%p272) target = $region56
        $region55: #{tpu_custom_call.1} parent=47 // pred_region
          %275 = dma.done [#allocation8], 256
        $region56: #{tpu_custom_call.1} parent=47 // pred_fallthru
          _
        %p276 = scmp.lt.s32.totalorder %s23, 1
        %s277 = scalar_select %p276, %s23, 1
        %s278 = smul.addr %s277, 2
        %s279 = smul.addr %s278, 8
        %s280 = scalar_lea.vmem %s0, %s279
        %p281 = pneg %p44
        %p282 = pneg %p41
        %p283 = pneg %p65
        %p284 = pneg %p62
        %p285 = pneg %p86
        %p286 = pneg %p83
        %p287 = pneg %p107
        %p288 = pneg %p104
        %p289 = pneg %p128
        %p290 = pneg %p125
        %p291 = pneg %p149
        %p292 = pneg %p146
        %p293 = pneg %p170
        %p294 = pneg %p167
        %p295 = pneg %p196
        %p296 = pneg %p193
        %s297 = sand.u32 %s183, 1
        %s298 = scalar_lea.sflag [#allocation6], %s297
        %s299 = sand.u32 %s183, 1
        %s300 = smul.addr %s299, 16
        %s301 = scalar_lea.vmem [#allocation9], %s300
        %p302 = scmp.lt.s32.totalorder %s23, 1
        %s303 = scalar_select %p302, %s23, 1
        %s304 = smul.addr %s303, 2
        %s305 = smul.addr %s304, 8
        %s306 = scalar_lea.vmem %s0, %s305
        %vm308 = vcmask 23552
        %309 = vst.msk [vmem:[#allocation3] sm:$0xff] %vm308, 0
        %vm310 = vcmask 179352
        %311 = vst.msk [vmem:[#allocation3] sm:$0xff] %vm310, 0
        %v312 = vld [vmem:[%s306] sm:$0xf]
        %vm313 = vcmask 125952
        %314 = vst.msk [vmem:[%s301] sm:$0xf] %vm313, %v312
        %v315 = vld [vmem:[%s306] sm:$0xff]
        %v316 = vld [vmem:[%s306 + $0x8] sm:$0xff]
        %v317 = vpack.c.bf16 %v316, %v315
        %319 = vrot.lane.b32.xlu0 %v317, 3
        %v320 = vpop.permute.xlu0 %319
        %vm322 = vcmask 154648
        %323 = vst.msk [vmem:[#allocation3] sm:$0xff] %vm322, %v320
        %v324 = vld [vmem:[#allocation3] sm:$0xff]
        %vm325 = vcmask 130048
        %326 = vst.msk [vmem:[#allocation2] sm:$0xff] %vm325, %v324
        %v327 = vld [vmem:[#allocation3] sm:$0xff]
        %329 = vrot.lane.b32.xlu0 %v327, 127
        %v330 = vpop.permute.xlu0 %329
        %332 = vst.msk [vmem:[#allocation2 + $0x8] sm:$0xff] %vm325, %v330
        %v333 = vld [vmem:[#allocation3] sm:$0xff]
        %335 = vrot.lane.b32.xlu0 %v333, 126
        %v336 = vpop.permute.xlu0 %335
        %338 = vst.msk [vmem:[#allocation2 + $0x10] sm:$0xff] %vm325, %v336
        %v339 = vld [vmem:[#allocation3] sm:$0xff]
        %341 = vrot.lane.b32.xlu0 %v339, 125
        %v342 = vpop.permute.xlu0 %341
        %344 = vst.msk [vmem:[#allocation2 + $0x18] sm:$0xff] %vm325, %v342
        %v345 = vld [vmem:[#allocation3] sm:$0xff]
        %347 = vrot.lane.b32.xlu0 %v345, 124
        %v348 = vpop.permute.xlu0 %347
        %350 = vst.msk [vmem:[#allocation2 + $0x20] sm:$0xff] %vm325, %v348
        %v351 = vld [vmem:[#allocation3] sm:$0xff]
        %353 = vrot.lane.b32.xlu0 %v351, 123
        %v354 = vpop.permute.xlu0 %353
        %356 = vst.msk [vmem:[#allocation2 + $0x28] sm:$0xff] %vm325, %v354
        %v357 = vld [vmem:[#allocation3] sm:$0xff]
        %359 = vrot.lane.b32.xlu0 %v357, 122
        %v360 = vpop.permute.xlu0 %359
        %362 = vst.msk [vmem:[#allocation2 + $0x30] sm:$0xff] %vm325, %v360
        %v363 = vld [vmem:[#allocation4] sm:$0xf]
        %v364 = vld [vmem:[#allocation4 + $0x4] sm:$0xf]
        %v365 = vld [vmem:[#allocation2] sm:$0xff]
        %v366 = vld [vmem:[#allocation2 + $0x8] sm:$0xff]
        %v367 = vld [vmem:[#allocation2 + $0x10] sm:$0xff]
        %v368 = vld [vmem:[#allocation2 + $0x18] sm:$0xff]
        %v369 = vld [vmem:[#allocation2 + $0x20] sm:$0xff]
        %v370 = vld [vmem:[#allocation2 + $0x28] sm:$0xff]
        %v371 = vld [vmem:[#allocation2 + $0x30] sm:$0xff]
        %v372 = vld [vmem:[%s2] sm:$0xff]
        %v373 = vld [vmem:[%s2 + $0x8] sm:$0xff]
        %375 = vset.pattern.permute.xlu0 0
        %376 = vperm.xlu0 %375, %v372
        %v377 = vpop.permute.xlu0 %376
        %380 = vset.pattern.permute.xlu0 0
        %381 = vperm.xlu0 %380, %v373
        %v382 = vpop.permute.xlu0 %381
        %v386 = vunpack.c.l.b16 %v363
        %v387 = vunpack.c.l.b16 %v364
        %v388 = vpack.c.b16 %v387, %v386
        %vm389 = vcmask 916480
        %v391 = vsel %vm389, %v388, 0
        %393 = vmatprep.subr.bf16.mxu0 0
        %394 = vmatpush1.bf16.msra.mxu0 %v365
        %395 = vmatprep.subr.bf16.mxu0 0
        %396 = vmatpush1.bf16.msra.mxu0 %v366
        %397 = vmatprep.subr.bf16.mxu0 0
        %398 = vmatpush1.bf16.msra.mxu0 %v367
        %399 = vmatprep.subr.bf16.mxu0 0
        %400 = vmatpush1.bf16.msra.mxu0 %v368
        %401 = vmatprep.subr.bf16.mxu0 0
        %402 = vmatpush1.bf16.msra.mxu0 %v369
        %403 = vmatprep.subr.bf16.mxu0 0
        %404 = vmatpush1.bf16.msra.mxu0 %v370
        %405 = vmatprep.subr.bf16.mxu0 0
        %406 = vmatpush1.bf16.msra.mxu0 %v371
        %407 = vmatprep.subr.bf16.mxu0 0
        %408 = vmatpush1.bf16.msra.mxu0 0
        %409 = vmatprep.subr.bf16.mxu0 0
        %410 = vmatpush1.bf16.msra.mxu0 0
        %411 = vmatprep.subr.bf16.mxu0 0
        %412 = vmatpush1.bf16.msra.mxu0 0
        %413 = vmatprep.subr.bf16.mxu0 0
        %414 = vmatpush1.bf16.msra.mxu0 0
        %415 = vmatprep.subr.bf16.mxu0 0
        %416 = vmatpush1.bf16.msra.mxu0 0
        %417 = vmatprep.subr.bf16.mxu0 0
        %418 = vmatpush1.bf16.msra.mxu0 0
        %419 = vmatprep.subr.bf16.mxu0 0
        %420 = vmatpush1.bf16.msra.mxu0 0
        %421 = vmatprep.subr.bf16.mxu0 0
        %422 = vmatpush1.bf16.msra.mxu0 0
        %423 = vmatprep.subr.bf16.mxu0 0
        %424 = vmatpush1.bf16.msra.mxu0 0
        %425 = vmatprep.mubr.bf16.mxu0 0
        %426 = vmatmul.mubr.bf16.gmra.mrb[0].mxu0 %v391
        %v427 = vpop.f32.mrb[0].mxu0
        %v428 = vadd.f32 %v377, %v427
        %v429 = vpop.f32.mrb[0].mxu0
        %v430 = vpop.f32.mrb[0].mxu0
        %v431 = vadd.f32 %v382, %v430
        %v432 = vpop.f32.mrb[0].mxu0
        %433 = vdwg.mxu0
        %v434 = vmax.f32 %v428, 0.0
        %v435 = vmax.f32 %v431, 0.0
        %436 = vst.msk [vmem:[%s301 + $0x4] sm:$0xf] %vm313, %v434
        %v437 = vpack.c.bf16 %v435, %v434
        %439 = vrot.lane.b32.xlu0 %v437, 3
        %v440 = vpop.permute.xlu0 %439
        %442 = vst.msk [vmem:[#allocation3] sm:$0xff] %vm322, %v440
        %v443 = vld [vmem:[#allocation3] sm:$0xff]
        %444 = vst.msk [vmem:[#allocation2 + $0x38] sm:$0xff] %vm325, %v443
        %v445 = vld [vmem:[#allocation3] sm:$0xff]
        %447 = vrot.lane.b32.xlu0 %v445, 127
        %v448 = vpop.permute.xlu0 %447
        %450 = vst.msk [vmem:[#allocation2 + $0x40] sm:$0xff] %vm325, %v448
        %v451 = vld [vmem:[#allocation3] sm:$0xff]
        %453 = vrot.lane.b32.xlu0 %v451, 126
        %v454 = vpop.permute.xlu0 %453
        %456 = vst.msk [vmem:[#allocation2 + $0x48] sm:$0xff] %vm325, %v454
        %v457 = vld [vmem:[#allocation3] sm:$0xff]
        %459 = vrot.lane.b32.xlu0 %v457, 125
        %v460 = vpop.permute.xlu0 %459
        %462 = vst.msk [vmem:[#allocation2 + $0x50] sm:$0xff] %vm325, %v460
        %v463 = vld [vmem:[#allocation3] sm:$0xff]
        %465 = vrot.lane.b32.xlu0 %v463, 124
        %v466 = vpop.permute.xlu0 %465
        %468 = vst.msk [vmem:[#allocation2 + $0x58] sm:$0xff] %vm325, %v466
        %v469 = vld [vmem:[#allocation3] sm:$0xff]
        %471 = vrot.lane.b32.xlu0 %v469, 123
        %v472 = vpop.permute.xlu0 %471
        %474 = vst.msk [vmem:[#allocation2 + $0x60] sm:$0xff] %vm325, %v472
        %v475 = vld [vmem:[#allocation3] sm:$0xff]
        %477 = vrot.lane.b32.xlu0 %v475, 122
        %v478 = vpop.permute.xlu0 %477
        %480 = vst.msk [vmem:[#allocation2 + $0x68] sm:$0xff] %vm325, %v478
        %v481 = vld [vmem:[#allocation7] sm:$0xff]
        %v482 = vld [vmem:[#allocation7 + $0x8] sm:$0xff]
        %v483 = vld [vmem:[#allocation2] sm:$0xff]
        %v484 = vld [vmem:[#allocation2 + $0x8] sm:$0xff]
        %v485 = vld [vmem:[#allocation2 + $0x10] sm:$0xff]
        %v486 = vld [vmem:[#allocation2 + $0x18] sm:$0xff]
        %v487 = vld [vmem:[#allocation2 + $0x20] sm:$0xff]
        %v488 = vld [vmem:[#allocation2 + $0x28] sm:$0xff]
        %v489 = vld [vmem:[#allocation2 + $0x30] sm:$0xff]
        %v490 = vld [vmem:[#allocation2 + $0x38] sm:$0xff]
        %v491 = vld [vmem:[#allocation2 + $0x40] sm:$0xff]
        %v492 = vld [vmem:[#allocation2 + $0x48] sm:$0xff]
        %v493 = vld [vmem:[#allocation2 + $0x50] sm:$0xff]
        %v494 = vld [vmem:[#allocation2 + $0x58] sm:$0xff]
        %v495 = vld [vmem:[#allocation2 + $0x60] sm:$0xff]
        %v496 = vld [vmem:[#allocation2 + $0x68] sm:$0xff]
        %v497 = vld [vmem:[%s4] sm:$0xff]
        %v498 = vld [vmem:[%s4 + $0x8] sm:$0xff]
        %500 = vset.pattern.permute.xlu0 0
        %501 = vperm.xlu0 %500, %v497
        %v502 = vpop.permute.xlu0 %501
        %505 = vset.pattern.permute.xlu0 0
        %506 = vperm.xlu0 %505, %v498
        %v507 = vpop.permute.xlu0 %506
        %v511 = vunpack.c.l.b16 %v481
        %v512 = vunpack.c.h.b16 %v481
        %v513 = vunpack.c.l.b16 %v482
        %v514 = vunpack.c.h.b16 %v482
        %v515 = vpack.c.b16 %v513, %v511
        %v516 = vpack.c.b16 %v514, %v512
        %vm518 = vcmask 785408
        %v520 = vsel %vm518, %v516, 0
        %522 = vmatprep.subr.bf16.mxu0 0
        %523 = vmatpush1.bf16.msra.mxu0 %v483
        %524 = vmatprep.subr.bf16.mxu0 0
        %525 = vmatpush1.bf16.msra.mxu0 %v484
        %526 = vmatprep.subr.bf16.mxu0 0
        %527 = vmatpush1.bf16.msra.mxu0 %v485
        %528 = vmatprep.subr.bf16.mxu0 0
        %529 = vmatpush1.bf16.msra.mxu0 %v486
        %530 = vmatprep.subr.bf16.mxu0 0
        %531 = vmatpush1.bf16.msra.mxu0 %v487
        %532 = vmatprep.subr.bf16.mxu0 0
        %533 = vmatpush1.bf16.msra.mxu0 %v488
        %534 = vmatprep.subr.bf16.mxu0 0
        %535 = vmatpush1.bf16.msra.mxu0 %v489
        %536 = vmatprep.subr.bf16.mxu0 0
        %537 = vmatpush1.bf16.msra.mxu0 %v490
        %538 = vmatprep.subr.bf16.mxu0 0
        %539 = vmatpush1.bf16.msra.mxu0 %v491
        %540 = vmatprep.subr.bf16.mxu0 0
        %541 = vmatpush1.bf16.msra.mxu0 %v492
        %542 = vmatprep.subr.bf16.mxu0 0
        %543 = vmatpush1.bf16.msra.mxu0 %v493
        %544 = vmatprep.subr.bf16.mxu0 0
        %545 = vmatpush1.bf16.msra.mxu0 %v494
        %546 = vmatprep.subr.bf16.mxu0 0
        %547 = vmatpush1.bf16.msra.mxu0 %v495
        %548 = vmatprep.subr.bf16.mxu0 0
        %549 = vmatpush1.bf16.msra.mxu0 %v496
        %550 = vmatprep.subr.bf16.mxu0 0
        %551 = vmatpush1.bf16.msra.mxu0 0
        %552 = vmatprep.subr.bf16.mxu0 0
        %553 = vmatpush1.bf16.msra.mxu0 0
        %554 = vmatprep.mubr.bf16.mxu0 %v520
        %555 = vmatmul.mubr.bf16.gmra.mrb[0].mxu0 %v515
        %v556 = vpop.f32.mrb[0].mxu0
        %v557 = vadd.f32 %v502, %v556
        %v558 = vpop.f32.mrb[0].mxu0
        %v559 = vpop.f32.mrb[0].mxu0
        %v560 = vadd.f32 %v507, %v559
        %v561 = vpop.f32.mrb[0].mxu0
        %562 = vdwg.mxu0
        %v563 = vmax.f32 %v557, 0.0
        %v564 = vmax.f32 %v560, 0.0
        %565 = vst.msk [vmem:[%s301 + $0x8] sm:$0xf] %vm313, %v563
        %v566 = vpack.c.bf16 %v564, %v563
        %568 = vrot.lane.b32.xlu0 %v566, 3
        %v569 = vpop.permute.xlu0 %568
        %571 = vst.msk [vmem:[#allocation3] sm:$0xff] %vm322, %v569
        %v572 = vld [vmem:[#allocation3] sm:$0xff]
        %573 = vst.msk [vmem:[#allocation2 + $0x70] sm:$0xff] %vm325, %v572
        %v574 = vld [vmem:[#allocation3] sm:$0xff]
        %576 = vrot.lane.b32.xlu0 %v574, 127
        %v577 = vpop.permute.xlu0 %576
        %579 = vst.msk [vmem:[#allocation2 + $0x78] sm:$0xff] %vm325, %v577
        %v580 = vld [vmem:[#allocation3] sm:$0xff]
        %582 = vrot.lane.b32.xlu0 %v580, 126
        %v583 = vpop.permute.xlu0 %582
        %585 = vst.msk [vmem:[#allocation2 + $0x80] sm:$0xff] %vm325, %v583
        %v586 = vld [vmem:[#allocation3] sm:$0xff]
        %588 = vrot.lane.b32.xlu0 %v586, 125
        %v589 = vpop.permute.xlu0 %588
        %591 = vst.msk [vmem:[#allocation2 + $0x88] sm:$0xff] %vm325, %v589
        %v592 = vld [vmem:[#allocation3] sm:$0xff]
        %594 = vrot.lane.b32.xlu0 %v592, 124
        %v595 = vpop.permute.xlu0 %594
        %597 = vst.msk [vmem:[#allocation2 + $0x90] sm:$0xff] %vm325, %v595
        %v598 = vld [vmem:[#allocation3] sm:$0xff]
        %600 = vrot.lane.b32.xlu0 %v598, 123
        %v601 = vpop.permute.xlu0 %600
        %603 = vst.msk [vmem:[#allocation2 + $0x98] sm:$0xff] %vm325, %v601
        %v604 = vld [vmem:[#allocation3] sm:$0xff]
        %606 = vrot.lane.b32.xlu0 %v604, 122
        %v607 = vpop.permute.xlu0 %606
        %609 = vst.msk [vmem:[#allocation2 + $0xa0] sm:$0xff] %vm325, %v607
        %v610 = vld [vmem:[%s5] sm:$0xff]
        %v611 = vld [vmem:[%s5 + $0x8] sm:$0xf]
        %v612 = vld [vmem:[%s5 + $0xc] sm:$0xff]
        %v613 = vld [vmem:[%s5 + $0x14] sm:$0xf]
        %v614 = vld [vmem:[#allocation2] sm:$0xff]
        %v615 = vld [vmem:[#allocation2 + $0x8] sm:$0xff]
        %v616 = vld [vmem:[#allocation2 + $0x10] sm:$0xff]
        %v617 = vld [vmem:[#allocation2 + $0x18] sm:$0xff]
        %v618 = vld [vmem:[#allocation2 + $0x20] sm:$0xff]
        %v619 = vld [vmem:[#allocation2 + $0x28] sm:$0xff]
        %v620 = vld [vmem:[#allocation2 + $0x30] sm:$0xff]
        %v621 = vld [vmem:[#allocation2 + $0x38] sm:$0xff]
        %v622 = vld [vmem:[#allocation2 + $0x40] sm:$0xff]
        %v623 = vld [vmem:[#allocation2 + $0x48] sm:$0xff]
        %v624 = vld [vmem:[#allocation2 + $0x50] sm:$0xff]
        %v625 = vld [vmem:[#allocation2 + $0x58] sm:$0xff]
        %v626 = vld [vmem:[#allocation2 + $0x60] sm:$0xff]
        %v627 = vld [vmem:[#allocation2 + $0x68] sm:$0xff]
        %v628 = vld [vmem:[#allocation2 + $0x70] sm:$0xff]
        %v629 = vld [vmem:[#allocation2 + $0x78] sm:$0xff]
        %v630 = vld [vmem:[#allocation2 + $0x80] sm:$0xff]
        %v631 = vld [vmem:[#allocation2 + $0x88] sm:$0xff]
        %v632 = vld [vmem:[#allocation2 + $0x90] sm:$0xff]
        %v633 = vld [vmem:[#allocation2 + $0x98] sm:$0xff]
        %v634 = vld [vmem:[#allocation2 + $0xa0] sm:$0xff]
        %v635 = vld [vmem:[%s6] sm:$0xff]
        %v636 = vld [vmem:[%s6 + $0x8] sm:$0xff]
        %638 = vset.pattern.permute.xlu0 0
        %639 = vperm.xlu0 %638, %v635
        %v640 = vpop.permute.xlu0 %639
        %643 = vset.pattern.permute.xlu0 0
        %644 = vperm.xlu0 %643, %v636
        %v645 = vpop.permute.xlu0 %644
        %v650 = vunpack.c.l.b16 %v610
        %v651 = vunpack.c.h.b16 %v610
        %v652 = vunpack.c.l.b16 %v611
        %v653 = vunpack.c.l.b16 %v612
        %v654 = vunpack.c.h.b16 %v612
        %v655 = vunpack.c.l.b16 %v613
        %v656 = vpack.c.b16 %v653, %v650
        %v657 = vpack.c.b16 %v654, %v651
        %v658 = vpack.c.b16 %v655, %v652
        %vm661 = vcmask 654336
        %v663 = vsel %vm661, %v658, 0
        %665 = vmatprep.subr.bf16.mxu0 0
        %666 = vmatpush1.bf16.msra.mxu0 %v614
        %667 = vmatprep.subr.bf16.mxu0 0
        %668 = vmatpush1.bf16.msra.mxu0 %v615
        %669 = vmatprep.subr.bf16.mxu0 0
        %670 = vmatpush1.bf16.msra.mxu0 %v616
        %671 = vmatprep.subr.bf16.mxu0 0
        %672 = vmatpush1.bf16.msra.mxu0 %v617
        %673 = vmatprep.subr.bf16.mxu0 0
        %674 = vmatpush1.bf16.msra.mxu0 %v618
        %675 = vmatprep.subr.bf16.mxu0 0
        %676 = vmatpush1.bf16.msra.mxu0 %v619
        %677 = vmatprep.subr.bf16.mxu0 0
        %678 = vmatpush1.bf16.msra.mxu0 %v620
        %679 = vmatprep.subr.bf16.mxu0 0
        %680 = vmatpush1.bf16.msra.mxu0 %v621
        %681 = vmatprep.subr.bf16.mxu0 0
        %682 = vmatpush1.bf16.msra.mxu0 %v622
        %683 = vmatprep.subr.bf16.mxu0 0
        %684 = vmatpush1.bf16.msra.mxu0 %v623
        %685 = vmatprep.subr.bf16.mxu0 0
        %686 = vmatpush1.bf16.msra.mxu0 %v624
        %687 = vmatprep.subr.bf16.mxu0 0
        %688 = vmatpush1.bf16.msra.mxu0 %v625
        %689 = vmatprep.subr.bf16.mxu0 0
        %690 = vmatpush1.bf16.msra.mxu0 %v626
        %691 = vmatprep.subr.bf16.mxu0 0
        %692 = vmatpush1.bf16.msra.mxu0 %v627
        %693 = vmatprep.subr.bf16.mxu0 0
        %694 = vmatpush1.bf16.msra.mxu0 %v628
        %695 = vmatprep.subr.bf16.mxu0 0
        %696 = vmatpush1.bf16.msra.mxu0 %v629
        %697 = vmatprep.mubr.bf16.mxu0 %v657
        %698 = vmatmul.mubr.bf16.gmra.mrb[0].mxu0 %v656
        %v699 = vpop.f32.mrb[0].mxu0
        %v700 = vadd.f32 %v640, %v699
        %v701 = vpop.f32.mrb[0].mxu0
        %v702 = vpop.f32.mrb[0].mxu0
        %v703 = vpop.f32.mrb[0].mxu0
        %704 = vdwg.mxu0
        %705 = vmatprep.subr.bf16.mxu0 0
        %706 = vmatpush1.bf16.msra.mxu0 %v630
        %707 = vmatprep.subr.bf16.mxu0 0
        %708 = vmatpush1.bf16.msra.mxu0 %v631
        %709 = vmatprep.subr.bf16.mxu0 0
        %710 = vmatpush1.bf16.msra.mxu0 %v632
        %711 = vmatprep.subr.bf16.mxu0 0
        %712 = vmatpush1.bf16.msra.mxu0 %v633
        %713 = vmatprep.subr.bf16.mxu0 0
        %714 = vmatpush1.bf16.msra.mxu0 %v634
        %715 = vmatprep.subr.bf16.mxu0 0
        %716 = vmatpush1.bf16.msra.mxu0 0
        %717 = vmatprep.subr.bf16.mxu0 0
        %718 = vmatpush1.bf16.msra.mxu0 0
        %719 = vmatprep.subr.bf16.mxu0 0
        %720 = vmatpush1.bf16.msra.mxu0 0
        %721 = vmatprep.subr.bf16.mxu0 0
        %722 = vmatpush1.bf16.msra.mxu0 0
        %723 = vmatprep.subr.bf16.mxu0 0
        %724 = vmatpush1.bf16.msra.mxu0 0
        %725 = vmatprep.subr.bf16.mxu0 0
        %726 = vmatpush1.bf16.msra.mxu0 0
        %727 = vmatprep.subr.bf16.mxu0 0
        %728 = vmatpush1.bf16.msra.mxu0 0
        %729 = vmatprep.subr.bf16.mxu0 0
        %730 = vmatpush1.bf16.msra.mxu0 0
        %731 = vmatprep.subr.bf16.mxu0 0
        %732 = vmatpush1.bf16.msra.mxu0 0
        %733 = vmatprep.subr.bf16.mxu0 0
        %734 = vmatpush1.bf16.msra.mxu0 0
        %735 = vmatprep.subr.bf16.mxu0 0
        %736 = vmatpush1.bf16.msra.mxu0 0
        %737 = vmatprep.mubr.bf16.mxu0 0
        %738 = vmatmul.mubr.bf16.gmra.mrb[0].mxu0 %v663
        %v739 = vpop.f32.mrb[0].mxu0
        %v740 = vadd.f32 %v700, %v739
        %v741 = vpop.f32.mrb[0].mxu0
        %v742 = vpop.f32.mrb[0].mxu0
        %v743 = vpop.f32.mrb[0].mxu0
        %744 = vdwg.mxu0
        %v745 = vmax.f32 %v740, 0.0
        %746 = vst.msk [vmem:[%s301 + $0xc] sm:$0xf] %vm313, %v745
        %s747 = sand.u32 %s183, 1
        %s748 = scalar_lea.sflag [#allocation6], %s747
        %s749 = sand.u32 %s183, 1
        %s750 = smul.addr %s749, 16
        %s751 = scalar_lea.vmem [#allocation9], %s750
        // Predicated region
        $region57: #{tpu_custom_call.1} parent=47 // pred_check
          %p752 = pneg %p193
        $region58: #{tpu_custom_call.1} parent=47 // pred_check_branch
          %754 = sbr.rel (%p752) target = $region60
        $region59: #{tpu_custom_call.1} parent=47 // pred_region
          %s756 = ssub.s32 256, 256
          %757 = vsyncadd %s748, %s756
          %s758 = smul.addr %s23, 2
          %s759 = smul.addr %s758, 128
          %s760 = scalar_lea.hbm %s7, %s759
          %s761 = sshll.u32 %s751, 4
          %s762 = int_to_ptr.vmem [resolvable:$true] %s761
          %767 = dma.vmem_to_hbm [thread:$0]  %s762, 256, %s760, %s748, 128, 128, 8
        $region60: #{tpu_custom_call.1} parent=47 // pred_fallthru
          _
      $region48: #{tpu_custom_call.1} parent=5 // pred_fallthru
        _
      %p768 = scmp.le.s32.totalorder 2, %s18
      // Predicated region
      $region61: #{tpu_custom_call.1} parent=5 // pred_check
        %p769 = pneg %p768
      $region62: #{tpu_custom_call.1} parent=5 // pred_check_branch
        %771 = sbr.rel (%p769) target = $region64
      $region63: #{tpu_custom_call.1} parent=5 // pred_region
        %s772 = ssub.s32 %s18, 2
        // Predicated region
        $region65: #{tpu_custom_call.1} parent=63 // pred_check
          %p773 = pneg %p199
        $region66: #{tpu_custom_call.1} parent=63 // pred_check_branch
          %775 = sbr.rel (%p773) target = $region68
        $region67: #{tpu_custom_call.1} parent=63 // pred_region
          %s776 = sand.u32 %s184, 1
          %s777 = scalar_lea.sflag [#allocation6], %s776
          %s778 = sand.u32 %s184, 1
          %s779 = smul.addr %s778, 16
          %s780 = scalar_lea.vmem [#allocation9], %s779
          %781 = dma.done %s777, 256
        $region68: #{tpu_custom_call.1} parent=63 // pred_fallthru
          _
      $region64: #{tpu_custom_call.1} parent=5 // pred_fallthru
        _
    $region6: #{tpu_custom_call.1} parent=1 // loop_footer
      %s22 = sadd.s32 1, %s18
    $region7: #{tpu_custom_call.1} parent=1 // loop_footer_branch
      %17 = sbr.rel target = $region3
    $region8: #{tpu_custom_call.1} parent=1 // loop_exit
      _
    %782 = vsyncpa [#allocation5], 1
    %s783 = scalar_lea.sflag [#allocation5], 1
    %784 = vsyncpa %s783, 1
    %785 = vsyncpa [#allocation8], 1
    %786 = vsyncpa [#allocation6], 1
    %s787 = scalar_lea.sflag [#allocation6], 1
    %788 = vsyncpa %s787, 1

</llo_original>
